<compile_context>
chip_gen: v7x
topology: tpu7x:2x2x1
jax: 0.10.0
libtpu: 0.0.40
codegen_flags: <defaults>
</compile_context>

<pallas_src>
import jax
import jax.numpy as jnp
from jax.experimental import pallas as pl
from jax.experimental.pallas import tpu as pltpu


def _mish_kernel(x_ref, o_ref):
    x = x_ref[...].astype(jnp.float32)
    # tanh(softplus(x)) == (u^2 + 2u) / (u^2 + 2u + 2) with u = exp(x).
    # Clamp the exp argument so u^2 never overflows; for x > 20 the value of
    # tanh(softplus(x)) is exactly 1.0 at f32 precision, so we select y = x.
    u = jnp.exp(jnp.minimum(x, 20.0))
    num = u * (u + 2.0)
    t = num / (num + 2.0)          # exact divide: kernel is memory-bound, div is free
    y = jnp.where(x > 20.0, x, x * t)
    o_ref[...] = y.astype(o_ref.dtype)


def _mish_jnp(x: jax.Array) -> jax.Array:
    # Pure-jnp path for ragged tails / tiny inputs (XLA fuses this for free).
    xf = x.astype(jnp.float32)
    return (xf * jnp.tanh(jax.nn.softplus(xf))).astype(x.dtype)


def mish_pallas(x: jax.Array, *, tile_rows: int = 8192,
                min_pallas_bytes: int = 128 * 1024) -> jax.Array:
    """Elementwise Mish (MishJit forward) via a Pallas TPU kernel.

    Works on any input shape/dtype. Inputs smaller than `min_pallas_bytes`
    bypass the kernel (custom-call setup cost dominates tiny activations).
    """
    orig_shape = x.shape
    orig_dtype = x.dtype
    total = x.size
    if total == 0:
        return x

    itemsize = jnp.dtype(orig_dtype).itemsize
    if total * itemsize < min_pallas_bytes:
        return _mish_jnp(x)

    lane = 128
    flat = x.reshape(-1)
    aligned = (total // lane) * lane
    tail = total - aligned
    if aligned == 0:
        return _mish_jnp(x)

    rows = aligned // lane
    # No padding copy: when total % 128 == 0 this reshape is pure metadata.
    x2d = flat[:aligned].reshape(rows, lane)

    # Sublane multiple required when the block is not the full row extent.
    sub = {4: 8, 2: 16, 1: 32}.get(itemsize, 8)
    min_rows = 512        # smallest block worth a grid step
    target_steps = 8      # >=3-4 pipelined steps per TensorCore (v7x has 2 TCs)

    if rows <= max(sub, min_rows):
        block_rows = rows  # full-extent block is always legal
    else:
        # Generation-aware cap: ~1/8 of VMEM per block (v7x 64 MiB vs 128 MiB on
        # v5e/v6e), bounded by tile_rows (default 4 MiB f32 blocks).
        vmem_bytes = 64 << 20
        try:
            vmem_bytes = int(pltpu.get_tpu_info().vmem_capacity_bytes)
        except Exception:
            pass
        cap_rows = max(min_rows, (vmem_bytes // 8) // (lane * itemsize))
        block_rows = min(tile_rows, cap_rows,
                         max(min_rows, pl.cdiv(rows, target_steps)))
        block_rows = max(sub, (block_rows // sub) * sub)
        block_rows = min(block_rows, rows)

    grid = (pl.cdiv(rows, block_rows),)

    cost = pl.CostEstimate(
        flops=7 * aligned,
        transcendentals=1 * aligned,            # one exp per element
        bytes_accessed=2 * aligned * itemsize,  # read + write
    )

    out2d = pl.pallas_call(
        _mish_kernel,
        out_shape=jax.ShapeDtypeStruct((rows, lane), orig_dtype),
        grid_spec=pltpu.PrefetchScalarGridSpec(
            num_scalar_prefetch=0,
            grid=grid,
            in_specs=[pl.BlockSpec((block_rows, lane), lambda i: (i, 0))],
            out_specs=pl.BlockSpec((block_rows, lane), lambda i: (i, 0)),
        ),
        compiler_params=pltpu.CompilerParams(
            dimension_semantics=("parallel",),
            vmem_limit_bytes=32 << 20,
        ),
        cost_estimate=cost,
    )(x2d)

    out = out2d.reshape(-1)
    if tail:
        # <=127-element ragged tail: plain fused jnp, no full-array pad/slice.
        out = jnp.concatenate([out, _mish_jnp(flat[aligned:])])
    return out.reshape(orig_shape)


def mish_ref(x: jax.Array) -> jax.Array:
    # pure-JAX reference: x * tanh(softplus(x))
    return x * jnp.tanh(jax.nn.softplus(x))


if __name__ == "__main__":
    key = jax.random.PRNGKey(0)
    k0, k1 = jax.random.split(key)

    # NCHW input, small shape consistent with an ImageNet-style activation.
    x = jax.random.normal(k0, (2, 4, 16, 16), dtype=jnp.float32) * 3.0
    # exercise the large-|x| guard paths deterministically
    x = x.at[0, 0, 0, 0].set(30.0)
    x = x.at[0, 0, 0, 1].set(-30.0)

    # min_pallas_bytes=0 forces the Pallas path even for this tiny test tensor.
    y = mish_pallas(x, min_pallas_bytes=0)
    jax.block_until_ready(y)

    y_ref = mish_ref(x)
    assert y.shape == x.shape and y.dtype == x.dtype
    assert jnp.allclose(y, y_ref, atol=5e-4, rtol=5e-4), "mismatch vs reference"
    assert bool(jnp.all(jnp.isfinite(y))), "non-finite output"

    # Ragged size (not a multiple of 128) exercises the kernel-prefix + jnp-tail path.
    x2 = jax.random.normal(k1, (3, 5, 7, 11), dtype=jnp.float32) * 3.0
    y2 = mish_pallas(x2, min_pallas_bytes=0)
    jax.block_until_ready(y2)
    assert jnp.allclose(y2, mish_ref(x2), atol=5e-4, rtol=5e-4), "ragged mismatch"

    print("KERNEL_OK")
</pallas_src>

<mosaic_0001>
module attributes {stable_mosaic.version = 11 : i64} {
  func.func @_mish_kernel(%arg0: i32, %arg1: memref<16x128xf32, #tpu.memory_space<vmem>>, %arg2: memref<16x128xf32, #tpu.memory_space<vmem>>) attributes {dimension_semantics = [#tpu.dimension_semantics<parallel>], iteration_bounds = array<i64: 1>, scalar_prefetch = 0 : i64, scratch_operands = 0 : i64, tpu.core_type = #tpu.core_type<tc>, window_params = [{transform_indices = @transform_0, window_bounds = array<i64: 16, 128>}, {transform_indices = @transform_1, window_bounds = array<i64: 16, 128>}]} {
    %c0 = arith.constant 0 : index
    %c0_0 = arith.constant 0 : index
    %0 = vector.load %arg1[%c0, %c0_0] : memref<16x128xf32, #tpu.memory_space<vmem>>, vector<16x128xf32>
    %cst = arith.constant 2.000000e+01 : f32
    %1 = vector.broadcast %cst : f32 to vector<16x128xf32>
    %2 = arith.minimumf %0, %1 : vector<16x128xf32>
    %3 = math.exp %2 : vector<16x128xf32>
    %cst_1 = arith.constant 2.000000e+00 : f32
    %4 = vector.broadcast %cst_1 : f32 to vector<16x128xf32>
    %5 = arith.addf %3, %4 : vector<16x128xf32>
    %6 = arith.mulf %3, %5 : vector<16x128xf32>
    %cst_2 = arith.constant 2.000000e+00 : f32
    %7 = vector.broadcast %cst_2 : f32 to vector<16x128xf32>
    %8 = arith.addf %6, %7 : vector<16x128xf32>
    %9 = arith.divf %6, %8 : vector<16x128xf32>
    %cst_3 = arith.constant 2.000000e+01 : f32
    %10 = vector.broadcast %cst_3 : f32 to vector<16x128xf32>
    %11 = arith.cmpf ogt, %0, %10 : vector<16x128xf32>
    %12 = arith.mulf %0, %9 : vector<16x128xf32>
    %13 = arith.select %11, %0, %12 : vector<16x128xi1>, vector<16x128xf32>
    %c0_4 = arith.constant 0 : index
    %c0_5 = arith.constant 0 : index
    %14 = vector.load %arg2[%c0_4, %c0_5] : memref<16x128xf32, #tpu.memory_space<vmem>>, vector<16x128xf32>
    tpu.vector_store %arg2[%c0_4, %c0_5], %13 {strides = array<i32>} : memref<16x128xf32, #tpu.memory_space<vmem>>, vector<16x128xf32>,
    return
  }
  func.func @transform_0(%arg0: i32) -> (i32, i32) {
    %c0_i32 = arith.constant 0 : i32
    %c0_i32_0 = arith.constant 0 : i32
    return %arg0, %c0_i32 : i32, i32
  }
  func.func @transform_1(%arg0: i32) -> (i32, i32) {
    %c0_i32 = arith.constant 0 : i32
    %c0_i32_0 = arith.constant 0 : i32
    return %arg0, %c0_i32 : i32, i32
  }
}

</mosaic_0001>

<llo_original>
// kernel: tpu_custom_call.1
$region0: #{tpu_custom_call.1}
  #allocation0 [shape = 'u32[]', space=smem, size = 0x4, offset = 0x4, fixed_abs, tag = 'smem constant byte address 0x4 - core index']
  #allocation1 [shape = 'u32[144,128]{1,0:T(1,128)}', space=vmem, size = 0x12000, scoped, tag = 'internal scratch']
  %s0 = inlined_call_operand.hbm [shape: f32[16,128], index: 0, kind: input, shape index: {}]
  %s1 = inlined_call_operand.hbm [shape: f32[16,128], index: 1, kind: output, shape index: {}]
  %s2 = sld [smem:[#allocation0]]
  $region18: #{tpu_custom_call.1} parent=0
    _
  %s4 = ssub.s32 1, %s2
  %s5 = scalar_select 0, %s4, %s2
  $region1: #{tpu_custom_call.1} parent=0
    #allocation2 [shape = 'u8[8192]{0}', space=vmem, size = 0x2000, scoped, tag = 'input window, operand 0, single buffered']
    #allocation3 [shape = 's32[1]{0}', space=sflag, size = 0x4, scoped, tag = 'scoped memory for tpu_custom_call.1']
    #allocation4 [shape = 's32[1]{0}', space=sflag, size = 0x4, scoped, tag = 'scoped memory for tpu_custom_call.1']
    #allocation5 [shape = 'u8[8192]{0}', space=vmem, size = 0x2000, scoped, tag = 'output window, operand 0, single buffered']
    %6 = vsyncpa [#allocation3], 0
    %7 = vsyncpa [#allocation4], 0
    // Predicated region
    $region2: #{tpu_custom_call.1} parent=1 // pred_check
      _
    $region3: #{tpu_custom_call.1} parent=1 // pred_check_branch
      %9 = sbr.rel (0) target = $region5
    $region4: #{tpu_custom_call.1} parent=1 // pred_region
      %s11 = ssub.s32 256, 256
      %12 = vsyncadd [#allocation3], %s11
      %s13 = sshll.u32 [#allocation2], 4
      %s14 = int_to_ptr.vmem [resolvable:$true] %s13
      %19 = dma.hbm_to_vmem [thread:$0]  %s0, 256, %s14, [#allocation3], 128, 128, 8
    $region5: #{tpu_custom_call.1} parent=1 // pred_fallthru
      _
    // Predicated region
    $region6: #{tpu_custom_call.1} parent=1 // pred_check
      _
    $region7: #{tpu_custom_call.1} parent=1 // pred_check_branch
      %21 = sbr.rel (0) target = $region9
    $region8: #{tpu_custom_call.1} parent=1 // pred_region
      %22 = dma.done [#allocation3], 256
    $region9: #{tpu_custom_call.1} parent=1 // pred_fallthru
      _
    %v23 = vld [vmem:[#allocation2] sm:$0xff]
    %v24 = vld [vmem:[#allocation2 + $0x8] sm:$0xff]
    %v25 = vmin.f32 %v23, 20.0
    %v26 = vmin.f32 %v24, 20.0
    %v27 = vmul.f32 %v25, 1.442695
    %v28 = vpow.pop %v27
    %v29 = vmul.f32 %v26, 1.442695
    %v30 = vpow.pop %v29
    %v31 = vadd.f32 %v28, 2.0
    %v32 = vadd.f32 %v30, 2.0
    %v33 = vmul.f32 %v28, %v31
    %v34 = vmul.f32 %v30, %v32
    %v35 = vadd.f32 %v33, 2.0
    %v36 = vadd.f32 %v34, 2.0
    %v37 = vrcp.pop %v35
    %v38 = vmul.f32 %v33, %v37
    %v39 = vrcp.pop %v36
    %v40 = vmul.f32 %v34, %v39
    %vm41 = vcmp.gt.f32.partialorder %v23, 20.0
    %vm42 = vcmp.gt.f32.partialorder %v24, 20.0
    %v43 = vmul.f32 %v23, %v38
    %v44 = vmul.f32 %v24, %v40
    %v45 = vsel %vm41, %v23, %v43
    %v46 = vsel %vm42, %v24, %v44
    %47 = vst [vmem:[#allocation5] sm:$0xff] %v45
    %48 = vst [vmem:[#allocation5 + $0x8] sm:$0xff] %v46
    // Predicated region
    $region10: #{tpu_custom_call.1} parent=1 // pred_check
      _
    $region11: #{tpu_custom_call.1} parent=1 // pred_check_branch
      %50 = sbr.rel (0) target = $region13
    $region12: #{tpu_custom_call.1} parent=1 // pred_region
      %s52 = ssub.s32 256, 256
      %53 = vsyncadd [#allocation4], %s52
      %s54 = sshll.u32 [#allocation5], 4
      %s55 = int_to_ptr.vmem [resolvable:$true] %s54
      %60 = dma.vmem_to_hbm [thread:$0]  %s55, 256, %s1, [#allocation4], 128, 128, 8
    $region13: #{tpu_custom_call.1} parent=1 // pred_fallthru
      _
    // Predicated region
    $region14: #{tpu_custom_call.1} parent=1 // pred_check
      _
    $region15: #{tpu_custom_call.1} parent=1 // pred_check_branch
      %62 = sbr.rel (0) target = $region17
    $region16: #{tpu_custom_call.1} parent=1 // pred_region
      %63 = dma.done [#allocation4], 256
    $region17: #{tpu_custom_call.1} parent=1 // pred_fallthru
      _
    %64 = vsyncpa [#allocation3], 1
    %65 = vsyncpa [#allocation4], 1

</llo_original>
